<compile_context>
chip_gen: v6e
topology: v6e:2x2x1
jax: 0.10.0
libtpu: 0.0.40
codegen_flags: <defaults>
</compile_context>

<pallas_src>
import functools

import jax
import jax.numpy as jnp
from jax.experimental import pallas as pl
from jax.experimental.pallas import tpu as pltpu

MARGIN = 1.0   # PyTorch default for this module
EPS = 1e-6     # torch.pairwise_distance: eps is added to the *difference*
               # before the norm (||x1 - x2 + eps||). Keep it that way.


def _round_up(x, m):
    return ((x + m - 1) // m) * m


def _vmem_capacity_bytes():
    """Physical per-core VMEM, with a conservative fallback (v7x size)."""
    try:
        info = pltpu.get_tpu_info()
        for attr in ("vmem_capacity_bytes", "vmem_size_bytes", "vmem_bytes"):
            v = getattr(info, attr, None)
            if v:
                return int(v)
    except Exception:
        pass
    return 64 * 1024 * 1024


def _pick_vmem_limit():
    cap = _vmem_capacity_bytes()
    # ~75% of physical (leave headroom for compiler internals), capped at 96 MiB.
    # -> ~96 MiB on v5e/v6e (128 MiB parts), ~48 MiB on v7x (64 MiB per TC).
    return max(32 * 1024 * 1024, min(int(0.75 * cap), 96 * 1024 * 1024))


def _choose_tile_rows(n_rows, d_lanes, itemsize, vmem_limit_bytes):
    """Rows per grid step, sized against lane-padded VMEM footprint."""
    sublane = max(8, 32 // itemsize)          # 8 f32, 16 bf16, 32 int8
    if n_rows <= sublane:
        # Single small block equal to the full array extent (allowed).
        return n_rows
    d_pad = _round_up(d_lanes, 128)           # physical lane padding in VMEM
    bytes_per_row = d_pad * itemsize
    budget = int(0.75 * vmem_limit_bytes)     # working-set budget per step
    max_rows = budget // (3 * 2 * bytes_per_row)   # 3 inputs, double-buffered
    tn = max(sublane, (max_rows // sublane) * sublane)
    # Guarantee >= 2 grid steps when possible so both v7x TensorCores stream.
    half = _round_up(pl.cdiv(n_rows, 2), sublane)
    tn = min(tn, half)
    tn = min(tn, _round_up(n_rows, sublane))
    return max(sublane, tn)


def _triplet_kernel(a_ref, p_ref, n_ref, o_ref, *,
                    n_rows, tile_rows, fold, feat, mask_rows):
    a = a_ref[...]
    p = p_ref[...]
    n = n_ref[...]
    if a.dtype != jnp.float32:
        a = a.astype(jnp.float32)
        p = p.astype(jnp.float32)
        n = n.astype(jnp.float32)

    # torch.pairwise_distance quirk: eps added to the difference, not inside sqrt.
    dp = a - p + EPS
    dn = a - n + EPS
    sp = dp * dp
    sn = dn * dn

    tn = sp.shape[0]
    if mask_rows:
        row = jax.lax.broadcasted_iota(jnp.int32, (tn, 1), 0)
        valid = (pl.program_id(0) * tile_rows + row) < n_rows          # (TN,1)
        # Zero padded rows *before* the reduction so unspecified OOB block data
        # can never produce inf/NaN.
        sp = jnp.where(valid, sp, 0.0)
        sn = jnp.where(valid, sn, 0.0)

    # `fold` samples live in contiguous `feat`-wide lane groups of each row;
    # reduce each group separately (static unrolled loop, fold <= 16).
    total = jnp.zeros((tn, 1), jnp.float32)
    for g in range(fold):
        lo = g * feat
        dpos = jnp.sqrt(jnp.sum(sp[:, lo:lo + feat], axis=-1, keepdims=True))
        dneg = jnp.sqrt(jnp.sum(sn[:, lo:lo + feat], axis=-1, keepdims=True))
        hinge = jnp.maximum(dpos - dneg + MARGIN, 0.0)                 # (TN,1)
        if mask_rows:
            hinge = jnp.where(valid, hinge, 0.0)
        total = total + hinge

    partial = jnp.sum(total, axis=0, keepdims=True)                    # (1,1)
    # Lane-dense unmasked (8,128) store of this tile's partial sum.
    o_ref[...] = jnp.broadcast_to(partial, o_ref.shape)


def triplet_loss(anchor, positive, negative, *, tile_rows=None):
    assert anchor.shape == positive.shape == negative.shape
    assert anchor.ndim == 2
    N, D = anchor.shape
    itemsize = jnp.dtype(anchor.dtype).itemsize

    # Lane-folding: pack fold = 128//D samples per physical row (free
    # row-major reshape) so tiles and DMAs are lane-dense for small D.
    fold = 1
    if D < 128 and 128 % D == 0:
        cand = 128 // D
        if cand <= 16 and N % cand == 0:
            fold = cand
    Nf, Df = N // fold, D * fold
    a = anchor.reshape(Nf, Df)
    p = positive.reshape(Nf, Df)
    n = negative.reshape(Nf, Df)

    vmem_limit = _pick_vmem_limit()
    TN = tile_rows if tile_rows is not None else _choose_tile_rows(
        Nf, Df, itemsize, vmem_limit)
    num_tiles = pl.cdiv(Nf, TN)
    mask_rows = (Nf % TN) != 0   # static: skip mask code on full tiles

    kernel = functools.partial(
        _triplet_kernel, n_rows=Nf, tile_rows=TN,
        fold=fold, feat=D, mask_rows=mask_rows)

    partials = pl.pallas_call(
        kernel,
        out_shape=jax.ShapeDtypeStruct((num_tiles * 8, 128), jnp.float32),
        grid=(num_tiles,),
        in_specs=[
            pl.BlockSpec((TN, Df), lambda i: (i, 0)),
            pl.BlockSpec((TN, Df), lambda i: (i, 0)),
            pl.BlockSpec((TN, Df), lambda i: (i, 0)),
        ],
        out_specs=pl.BlockSpec((8, 128), lambda i: (i, 0)),
        compiler_params=pltpu.CompilerParams(
            dimension_semantics=("parallel",),
            vmem_limit_bytes=int(vmem_limit),
        ),
    )(a, p, n)

    # Each (8,128) tile is filled with that tile's partial sum: pick one element
    # per tile, sum, divide by N for the mean.
    return jnp.sum(partials[0::8, 0]) / N


def triplet_loss_ref(anchor, positive, negative):
    # Pure-JAX reference mirroring torch.nn.TripletMarginLoss semantics.
    a = anchor.astype(jnp.float32)
    p = positive.astype(jnp.float32)
    n = negative.astype(jnp.float32)
    dpos = jnp.sqrt(jnp.sum((a - p + EPS) ** 2, axis=-1))
    dneg = jnp.sqrt(jnp.sum((a - n + EPS) ** 2, axis=-1))
    return jnp.mean(jnp.maximum(dpos - dneg + MARGIN, 0.0))


if __name__ == "__main__":
    key = jax.random.PRNGKey(0)

    # Case 1: small single-tile, small-D fold path (batch=8, dim=32).
    k_a, k_p, k_n, key = jax.random.split(key, 4)
    a1 = jax.random.normal(k_a, (8, 32), dtype=jnp.float32)
    p1 = jax.random.normal(k_p, (8, 32), dtype=jnp.float32)
    n1 = jax.random.normal(k_n, (8, 32), dtype=jnp.float32)
    out1 = jax.block_until_ready(triplet_loss(a1, p1, n1))
    ref1 = jax.block_until_ready(triplet_loss_ref(a1, p1, n1))
    assert jnp.allclose(out1, ref1, atol=1e-5, rtol=1e-5), (out1, ref1)

    # Case 2: multi-tile, lane-folded, partial (masked) last tile.
    k_a, k_p, k_n, key = jax.random.split(key, 4)
    a2 = jax.random.normal(k_a, (300, 32), dtype=jnp.float32)
    p2 = jax.random.normal(k_p, (300, 32), dtype=jnp.float32)
    n2 = jax.random.normal(k_n, (300, 32), dtype=jnp.float32)
    out2 = jax.block_until_ready(triplet_loss(a2, p2, n2))
    ref2 = jax.block_until_ready(triplet_loss_ref(a2, p2, n2))
    assert jnp.allclose(out2, ref2, atol=1e-5, rtol=1e-5), (out2, ref2)

    # Case 3: multi-tile, no fold (D multiple of 128), partial (masked) last tile.
    k_a, k_p, k_n, key = jax.random.split(key, 4)
    a3 = jax.random.normal(k_a, (100, 256), dtype=jnp.float32)
    p3 = jax.random.normal(k_p, (100, 256), dtype=jnp.float32)
    n3 = jax.random.normal(k_n, (100, 256), dtype=jnp.float32)
    out3 = jax.block_until_ready(triplet_loss(a3, p3, n3))
    ref3 = jax.block_until_ready(triplet_loss_ref(a3, p3, n3))
    assert jnp.allclose(out3, ref3, atol=1e-5, rtol=1e-5), (out3, ref3)

    print("KERNEL_OK")
</pallas_src>

<mosaic_0001>
module attributes {stable_mosaic.version = 11 : i64} {
  func.func @_triplet_kernel(%arg0: i32, %arg1: memref<2x128xf32, #tpu.memory_space<vmem>>, %arg2: memref<2x128xf32, #tpu.memory_space<vmem>>, %arg3: memref<2x128xf32, #tpu.memory_space<vmem>>, %arg4: memref<8x128xf32, #tpu.memory_space<vmem>>) attributes {dimension_semantics = [#tpu.dimension_semantics<parallel>], iteration_bounds = array<i64: 1>, scalar_prefetch = 0 : i64, scratch_operands = 0 : i64, tpu.core_type = #tpu.core_type<tc>, window_params = [{transform_indices = @transform_0, window_bounds = array<i64: 2, 128>}, {transform_indices = @transform_1, window_bounds = array<i64: 2, 128>}, {transform_indices = @transform_2, window_bounds = array<i64: 2, 128>}, {transform_indices = @transform_3, window_bounds = array<i64: 8, 128>}]} {
    %c0 = arith.constant 0 : index
    %c0_0 = arith.constant 0 : index
    %0 = vector.load %arg1[%c0, %c0_0] : memref<2x128xf32, #tpu.memory_space<vmem>>, vector<2x128xf32>
    %c0_1 = arith.constant 0 : index
    %c0_2 = arith.constant 0 : index
    %1 = vector.load %arg2[%c0_1, %c0_2] : memref<2x128xf32, #tpu.memory_space<vmem>>, vector<2x128xf32>
    %c0_3 = arith.constant 0 : index
    %c0_4 = arith.constant 0 : index
    %2 = vector.load %arg3[%c0_3, %c0_4] : memref<2x128xf32, #tpu.memory_space<vmem>>, vector<2x128xf32>
    %3 = arith.subf %0, %1 : vector<2x128xf32>
    %cst = arith.constant 9.99999997E-7 : f32
    %4 = vector.broadcast %cst : f32 to vector<2x128xf32>
    %5 = arith.addf %3, %4 : vector<2x128xf32>
    %6 = arith.subf %0, %2 : vector<2x128xf32>
    %cst_5 = arith.constant 9.99999997E-7 : f32
    %7 = vector.broadcast %cst_5 : f32 to vector<2x128xf32>
    %8 = arith.addf %6, %7 : vector<2x128xf32>
    %9 = arith.mulf %5, %5 : vector<2x128xf32>
    %10 = arith.mulf %8, %8 : vector<2x128xf32>
    %cst_6 = arith.constant 0.000000e+00 : f32
    %11 = vector.broadcast %cst_6 : f32 to vector<2x1xf32>
    %12 = vector.extract_strided_slice %9 {offsets = [0, 0], sizes = [2, 32], strides = [1, 1]} : vector<2x128xf32> to vector<2x32xf32>
    %cst_7 = arith.constant dense<0.000000e+00> : vector<2xf32>
    %13 = vector.multi_reduction <add>, %12, %cst_7 [1] : vector<2x32xf32> to vector<2xf32>
    %14 = vector.shape_cast %13 : vector<2xf32> to vector<2x1xf32>
    %15 = math.sqrt %14 : vector<2x1xf32>
    %16 = vector.extract_strided_slice %10 {offsets = [0, 0], sizes = [2, 32], strides = [1, 1]} : vector<2x128xf32> to vector<2x32xf32>
    %cst_8 = arith.constant dense<0.000000e+00> : vector<2xf32>
    %17 = vector.multi_reduction <add>, %16, %cst_8 [1] : vector<2x32xf32> to vector<2xf32>
    %18 = vector.shape_cast %17 : vector<2xf32> to vector<2x1xf32>
    %19 = math.sqrt %18 : vector<2x1xf32>
    %20 = arith.subf %15, %19 : vector<2x1xf32>
    %cst_9 = arith.constant 1.000000e+00 : f32
    %21 = vector.broadcast %cst_9 : f32 to vector<2x1xf32>
    %22 = arith.addf %20, %21 : vector<2x1xf32>
    %cst_10 = arith.constant 0.000000e+00 : f32
    %23 = vector.broadcast %cst_10 : f32 to vector<2x1xf32>
    %24 = arith.maximumf %22, %23 : vector<2x1xf32>
    %25 = arith.addf %11, %24 : vector<2x1xf32>
    %26 = vector.extract_strided_slice %9 {offsets = [0, 32], sizes = [2, 32], strides = [1, 1]} : vector<2x128xf32> to vector<2x32xf32>
    %cst_11 = arith.constant dense<0.000000e+00> : vector<2xf32>
    %27 = vector.multi_reduction <add>, %26, %cst_11 [1] : vector<2x32xf32> to vector<2xf32>
    %28 = vector.shape_cast %27 : vector<2xf32> to vector<2x1xf32>
    %29 = math.sqrt %28 : vector<2x1xf32>
    %30 = vector.extract_strided_slice %10 {offsets = [0, 32], sizes = [2, 32], strides = [1, 1]} : vector<2x128xf32> to vector<2x32xf32>
    %cst_12 = arith.constant dense<0.000000e+00> : vector<2xf32>
    %31 = vector.multi_reduction <add>, %30, %cst_12 [1] : vector<2x32xf32> to vector<2xf32>
    %32 = vector.shape_cast %31 : vector<2xf32> to vector<2x1xf32>
    %33 = math.sqrt %32 : vector<2x1xf32>
    %34 = arith.subf %29, %33 : vector<2x1xf32>
    %cst_13 = arith.constant 1.000000e+00 : f32
    %35 = vector.broadcast %cst_13 : f32 to vector<2x1xf32>
    %36 = arith.addf %34, %35 : vector<2x1xf32>
    %cst_14 = arith.constant 0.000000e+00 : f32
    %37 = vector.broadcast %cst_14 : f32 to vector<2x1xf32>
    %38 = arith.maximumf %36, %37 : vector<2x1xf32>
    %39 = arith.addf %25, %38 : vector<2x1xf32>
    %40 = vector.extract_strided_slice %9 {offsets = [0, 64], sizes = [2, 32], strides = [1, 1]} : vector<2x128xf32> to vector<2x32xf32>
    %cst_15 = arith.constant dense<0.000000e+00> : vector<2xf32>
    %41 = vector.multi_reduction <add>, %40, %cst_15 [1] : vector<2x32xf32> to vector<2xf32>
    %42 = vector.shape_cast %41 : vector<2xf32> to vector<2x1xf32>
    %43 = math.sqrt %42 : vector<2x1xf32>
    %44 = vector.extract_strided_slice %10 {offsets = [0, 64], sizes = [2, 32], strides = [1, 1]} : vector<2x128xf32> to vector<2x32xf32>
    %cst_16 = arith.constant dense<0.000000e+00> : vector<2xf32>
    %45 = vector.multi_reduction <add>, %44, %cst_16 [1] : vector<2x32xf32> to vector<2xf32>
    %46 = vector.shape_cast %45 : vector<2xf32> to vector<2x1xf32>
    %47 = math.sqrt %46 : vector<2x1xf32>
    %48 = arith.subf %43, %47 : vector<2x1xf32>
    %cst_17 = arith.constant 1.000000e+00 : f32
    %49 = vector.broadcast %cst_17 : f32 to vector<2x1xf32>
    %50 = arith.addf %48, %49 : vector<2x1xf32>
    %cst_18 = arith.constant 0.000000e+00 : f32
    %51 = vector.broadcast %cst_18 : f32 to vector<2x1xf32>
    %52 = arith.maximumf %50, %51 : vector<2x1xf32>
    %53 = arith.addf %39, %52 : vector<2x1xf32>
    %54 = vector.extract_strided_slice %9 {offsets = [0, 96], sizes = [2, 32], strides = [1, 1]} : vector<2x128xf32> to vector<2x32xf32>
    %cst_19 = arith.constant dense<0.000000e+00> : vector<2xf32>
    %55 = vector.multi_reduction <add>, %54, %cst_19 [1] : vector<2x32xf32> to vector<2xf32>
    %56 = vector.shape_cast %55 : vector<2xf32> to vector<2x1xf32>
    %57 = math.sqrt %56 : vector<2x1xf32>
    %58 = vector.extract_strided_slice %10 {offsets = [0, 96], sizes = [2, 32], strides = [1, 1]} : vector<2x128xf32> to vector<2x32xf32>
    %cst_20 = arith.constant dense<0.000000e+00> : vector<2xf32>
    %59 = vector.multi_reduction <add>, %58, %cst_20 [1] : vector<2x32xf32> to vector<2xf32>
    %60 = vector.shape_cast %59 : vector<2xf32> to vector<2x1xf32>
    %61 = math.sqrt %60 : vector<2x1xf32>
    %62 = arith.subf %57, %61 : vector<2x1xf32>
    %cst_21 = arith.constant 1.000000e+00 : f32
    %63 = vector.broadcast %cst_21 : f32 to vector<2x1xf32>
    %64 = arith.addf %62, %63 : vector<2x1xf32>
    %cst_22 = arith.constant 0.000000e+00 : f32
    %65 = vector.broadcast %cst_22 : f32 to vector<2x1xf32>
    %66 = arith.maximumf %64, %65 : vector<2x1xf32>
    %67 = arith.addf %53, %66 : vector<2x1xf32>
    %cst_23 = arith.constant dense<0.000000e+00> : vector<1xf32>
    %68 = vector.multi_reduction <add>, %67, %cst_23 [0] : vector<2x1xf32> to vector<1xf32>
    %69 = vector.shape_cast %68 : vector<1xf32> to vector<1x1xf32>
    %70 = vector.shape_cast %69 : vector<1x1xf32> to vector<1x1xf32>
    %71 = vector.broadcast %70 : vector<1x1xf32> to vector<8x128xf32>
    %c0_24 = arith.constant 0 : index
    %c0_25 = arith.constant 0 : index
    %72 = vector.load %arg4[%c0_24, %c0_25] : memref<8x128xf32, #tpu.memory_space<vmem>>, vector<8x128xf32>
    tpu.vector_store %arg4[%c0_24, %c0_25], %71 {strides = array<i32>} : memref<8x128xf32, #tpu.memory_space<vmem>>, vector<8x128xf32>,
    return
  }
  func.func @transform_0(%arg0: i32) -> (i32, i32) {
    %c0_i32 = arith.constant 0 : i32
    %c0_i32_0 = arith.constant 0 : i32
    return %arg0, %c0_i32 : i32, i32
  }
  func.func @transform_1(%arg0: i32) -> (i32, i32) {
    %c0_i32 = arith.constant 0 : i32
    %c0_i32_0 = arith.constant 0 : i32
    return %arg0, %c0_i32 : i32, i32
  }
  func.func @transform_2(%arg0: i32) -> (i32, i32) {
    %c0_i32 = arith.constant 0 : i32
    %c0_i32_0 = arith.constant 0 : i32
    return %arg0, %c0_i32 : i32, i32
  }
  func.func @transform_3(%arg0: i32) -> (i32, i32) {
    %c0_i32 = arith.constant 0 : i32
    %c0_i32_0 = arith.constant 0 : i32
    return %arg0, %c0_i32 : i32, i32
  }
}

</mosaic_0001>

<llo_original>
// kernel: tpu_custom_call.1
$region0: #{tpu_custom_call.1}
  #allocation0 [shape = 'u32[]', space=smem, size = 0x4, offset = 0x4, fixed_abs, tag = 'smem constant byte address 0x4 - core index']
  #allocation1 [shape = 'u32[144,128]{1,0:T(1,128)}', space=vmem, size = 0x12000, scoped, tag = 'internal scratch']
  %s0 = inlined_call_operand.hbm [shape: f32[2,128], index: 0, kind: input, shape index: {}]
  %s1 = inlined_call_operand.hbm [shape: f32[2,128], index: 1, kind: input, shape index: {}]
  %s2 = inlined_call_operand.vmem [shape: f32[2,128], index: 2, kind: input, shape index: {}]
  %s3 = inlined_call_operand.hbm [shape: f32[8,128], index: 3, kind: output, shape index: {}]
  %s4 = sld [smem:[#allocation0]]
  $region30: #{tpu_custom_call.1} parent=0
    _
  %s6 = ssub.s32 1, %s4
  %s7 = scalar_select 0, %s6, %s4
  $region1: #{tpu_custom_call.1} parent=0
    #allocation2 [shape = 'u8[1024]{0}', space=vmem, size = 0x400, scoped, tag = 'input window, operand 0, single buffered']
    #allocation3 [shape = 's32[1]{0}', space=sflag, size = 0x4, scoped, tag = 'scoped memory for tpu_custom_call.1']
    #allocation4 [shape = 's32[1]{0}', space=sflag, size = 0x4, scoped, tag = 'scoped memory for tpu_custom_call.1']
    #allocation5 [shape = 'u8[1024]{0}', space=vmem, size = 0x400, scoped, tag = 'input window, operand 1, single buffered']
    #allocation6 [shape = 's32[1]{0}', space=sflag, size = 0x4, scoped, tag = 'scoped memory for tpu_custom_call.1']
    #allocation7 [shape = 'u8[4096]{0}', space=vmem, size = 0x1000, scoped, tag = 'output window, operand 0, single buffered']
    %8 = vsyncpa [#allocation3], 0
    %9 = vsyncpa [#allocation6], 0
    %10 = vsyncpa [#allocation4], 0
    // Predicated region
    $region2: #{tpu_custom_call.1} parent=1 // pred_check
      _
    $region3: #{tpu_custom_call.1} parent=1 // pred_check_branch
      %12 = sbr.rel (0) target = $region5
    $region4: #{tpu_custom_call.1} parent=1 // pred_region
      %s14 = ssub.s32 32, 32
      %15 = vsyncadd [#allocation3], %s14
      %s17 = sshll.u32 [#allocation2], 4
      %s18 = int_to_ptr.vmem [resolvable:$true] %s17
      %20 = dma.hbm_to_vmem [thread:$0]  %s0, 32, %s18, [#allocation3]
    $region5: #{tpu_custom_call.1} parent=1 // pred_fallthru
      _
    // Predicated region
    $region6: #{tpu_custom_call.1} parent=1 // pred_check
      _
    $region7: #{tpu_custom_call.1} parent=1 // pred_check_branch
      %22 = sbr.rel (0) target = $region9
    $region8: #{tpu_custom_call.1} parent=1 // pred_region
      %s24 = ssub.s32 32, 32
      %25 = vsyncadd [#allocation6], %s24
      %s27 = sshll.u32 [#allocation5], 4
      %s28 = int_to_ptr.vmem [resolvable:$true] %s27
      %30 = dma.hbm_to_vmem [thread:$0]  %s1, 32, %s28, [#allocation6]
    $region9: #{tpu_custom_call.1} parent=1 // pred_fallthru
      _
    // Predicated region
    $region10: #{tpu_custom_call.1} parent=1 // pred_check
      _
    $region11: #{tpu_custom_call.1} parent=1 // pred_check_branch
      %32 = sbr.rel (0) target = $region13
    $region12: #{tpu_custom_call.1} parent=1 // pred_region
      _
    $region13: #{tpu_custom_call.1} parent=1 // pred_fallthru
      _
    // Predicated region
    $region14: #{tpu_custom_call.1} parent=1 // pred_check
      _
    $region15: #{tpu_custom_call.1} parent=1 // pred_check_branch
      %34 = sbr.rel (0) target = $region17
    $region16: #{tpu_custom_call.1} parent=1 // pred_region
      %35 = dma.done [#allocation3], 32
    $region17: #{tpu_custom_call.1} parent=1 // pred_fallthru
      _
    // Predicated region
    $region18: #{tpu_custom_call.1} parent=1 // pred_check
      _
    $region19: #{tpu_custom_call.1} parent=1 // pred_check_branch
      %37 = sbr.rel (0) target = $region21
    $region20: #{tpu_custom_call.1} parent=1 // pred_region
      %38 = dma.done [#allocation6], 32
    $region21: #{tpu_custom_call.1} parent=1 // pred_fallthru
      _
    %v39 = vld [vmem:[#allocation2] sm:$0x3]
    %v40 = vld [vmem:[#allocation5] sm:$0x3]
    %v41 = vld [vmem:[%s2] sm:$0x3]
    %v42 = vsub.f32 %v39, %v40
    %v43 = vadd.f32 %v42, 1e-06
    %v44 = vsub.f32 %v39, %v41
    %v45 = vadd.f32 %v44, 1e-06
    %v46 = vmul.f32 %v43, %v43
    %v47 = vmul.f32 %v45, %v45
    %vm48 = vcmask 254976
    %v49 = vsel %vm48, %v46, 0.0
    %50 = vadd.xlane.f32.xlu0 %v49
    %v51 = vpop.xlane.xlu0 %50
    %v52 = vrsqrt.pop %v51
    %v53 = vmul.f32 %v51, %v52
    %vm54 = vcmp.eq.f32.partialorder %v51, inf
    %v55 = vsel %vm54, %v51, %v53
    %vm56 = vcmp.eq.f32.partialorder %v51, 0.0
    %v57 = vand.u32 %v51, 2147483648
    %v58 = vsel %vm56, %v57, %v55
    %v59 = vsel %vm48, %v47, 0.0
    %60 = vadd.xlane.f32.xlu0 %v59
    %v61 = vpop.xlane.xlu0 %60
    %v62 = vrsqrt.pop %v61
    %v63 = vmul.f32 %v61, %v62
    %vm64 = vcmp.eq.f32.partialorder %v61, inf
    %v65 = vsel %vm64, %v61, %v63
    %vm66 = vcmp.eq.f32.partialorder %v61, 0.0
    %v67 = vand.u32 %v61, 2147483648
    %v68 = vsel %vm66, %v67, %v65
    %v69 = vsub.f32 %v58, %v68
    %v70 = vadd.f32 %v69, 1.0
    %v71 = vmax.f32 %v70, 0.0
    %v72 = vadd.f32 %v71, 0.0
    %74 = vrot.lane.b32.xlu0 %v46, 96
    %v75 = vpop.permute.xlu0 %74
    %v77 = vsel %vm48, %v75, 0.0
    %78 = vadd.xlane.f32.xlu0 %v77
    %v79 = vpop.xlane.xlu0 %78
    %v80 = vrsqrt.pop %v79
    %v81 = vmul.f32 %v79, %v80
    %vm82 = vcmp.eq.f32.partialorder %v79, inf
    %v83 = vsel %vm82, %v79, %v81
    %vm84 = vcmp.eq.f32.partialorder %v79, 0.0
    %v85 = vand.u32 %v79, 2147483648
    %v86 = vsel %vm84, %v85, %v83
    %88 = vrot.lane.b32.xlu0 %v47, 96
    %v89 = vpop.permute.xlu0 %88
    %v91 = vsel %vm48, %v89, 0.0
    %92 = vadd.xlane.f32.xlu0 %v91
    %v93 = vpop.xlane.xlu0 %92
    %v94 = vrsqrt.pop %v93
    %v95 = vmul.f32 %v93, %v94
    %vm96 = vcmp.eq.f32.partialorder %v93, inf
    %v97 = vsel %vm96, %v93, %v95
    %vm98 = vcmp.eq.f32.partialorder %v93, 0.0
    %v99 = vand.u32 %v93, 2147483648
    %v100 = vsel %vm98, %v99, %v97
    %v101 = vsub.f32 %v86, %v100
    %v102 = vadd.f32 %v101, 1.0
    %v103 = vmax.f32 %v102, 0.0
    %v104 = vadd.f32 %v72, %v103
    %105 = vrot.lane.b32.xlu0 %v46, 64
    %v106 = vpop.permute.xlu0 %105
    %v108 = vsel %vm48, %v106, 0.0
    %109 = vadd.xlane.f32.xlu0 %v108
    %v110 = vpop.xlane.xlu0 %109
    %v111 = vrsqrt.pop %v110
    %v112 = vmul.f32 %v110, %v111
    %vm113 = vcmp.eq.f32.partialorder %v110, inf
    %v114 = vsel %vm113, %v110, %v112
    %vm115 = vcmp.eq.f32.partialorder %v110, 0.0
    %v116 = vand.u32 %v110, 2147483648
    %v117 = vsel %vm115, %v116, %v114
    %118 = vrot.lane.b32.xlu0 %v47, 64
    %v119 = vpop.permute.xlu0 %118
    %v121 = vsel %vm48, %v119, 0.0
    %122 = vadd.xlane.f32.xlu0 %v121
    %v123 = vpop.xlane.xlu0 %122
    %v124 = vrsqrt.pop %v123
    %v125 = vmul.f32 %v123, %v124
    %vm126 = vcmp.eq.f32.partialorder %v123, inf
    %v127 = vsel %vm126, %v123, %v125
    %vm128 = vcmp.eq.f32.partialorder %v123, 0.0
    %v129 = vand.u32 %v123, 2147483648
    %v130 = vsel %vm128, %v129, %v127
    %v131 = vsub.f32 %v117, %v130
    %v132 = vadd.f32 %v131, 1.0
    %v133 = vmax.f32 %v132, 0.0
    %v134 = vadd.f32 %v104, %v133
    %135 = vrot.lane.b32.xlu0 %v46, 32
    %v136 = vpop.permute.xlu0 %135
    %v138 = vsel %vm48, %v136, 0.0
    %139 = vadd.xlane.f32.xlu0 %v138
    %v140 = vpop.xlane.xlu0 %139
    %v141 = vrsqrt.pop %v140
    %v142 = vmul.f32 %v140, %v141
    %vm143 = vcmp.eq.f32.partialorder %v140, inf
    %v144 = vsel %vm143, %v140, %v142
    %vm145 = vcmp.eq.f32.partialorder %v140, 0.0
    %v146 = vand.u32 %v140, 2147483648
    %v147 = vsel %vm145, %v146, %v144
    %148 = vrot.lane.b32.xlu0 %v47, 32
    %v149 = vpop.permute.xlu0 %148
    %v151 = vsel %vm48, %v149, 0.0
    %152 = vadd.xlane.f32.xlu0 %v151
    %v153 = vpop.xlane.xlu0 %152
    %v154 = vrsqrt.pop %v153
    %v155 = vmul.f32 %v153, %v154
    %vm156 = vcmp.eq.f32.partialorder %v153, inf
    %v157 = vsel %vm156, %v153, %v155
    %vm158 = vcmp.eq.f32.partialorder %v153, 0.0
    %v159 = vand.u32 %v153, 2147483648
    %v160 = vsel %vm158, %v159, %v157
    %v161 = vsub.f32 %v147, %v160
    %v162 = vadd.f32 %v161, 1.0
    %v163 = vmax.f32 %v162, 0.0
    %v164 = vadd.f32 %v134, %v163
    %vm165 = vcmask 1041408
    %v166 = vsel %vm165, %v164, 0.0
    %v167 = vrot.slane %v166, 4
    %v168 = vadd.f32 %v166, %v167
    %v169 = vrot.slane %v168, 2
    %v170 = vadd.f32 %v168, %v169
    %v171 = vrot.slane %v170, 1
    %v172 = vadd.f32 %v170, %v171
    %173 = vst [vmem:[#allocation7] sm:$0xff] %v172
    // Predicated region
    $region22: #{tpu_custom_call.1} parent=1 // pred_check
      _
    $region23: #{tpu_custom_call.1} parent=1 // pred_check_branch
      %175 = sbr.rel (0) target = $region25
    $region24: #{tpu_custom_call.1} parent=1 // pred_region
      %s177 = ssub.s32 128, 128
      %178 = vsyncadd [#allocation4], %s177
      %s180 = sshll.u32 [#allocation7], 4
      %s181 = int_to_ptr.vmem [resolvable:$true] %s180
      %183 = dma.vmem_to_hbm [thread:$0]  %s181, 128, %s3, [#allocation4]
    $region25: #{tpu_custom_call.1} parent=1 // pred_fallthru
      _
    // Predicated region
    $region26: #{tpu_custom_call.1} parent=1 // pred_check
      _
    $region27: #{tpu_custom_call.1} parent=1 // pred_check_branch
      %185 = sbr.rel (0) target = $region29
    $region28: #{tpu_custom_call.1} parent=1 // pred_region
      %186 = dma.done [#allocation4], 128
    $region29: #{tpu_custom_call.1} parent=1 // pred_fallthru
      _
    %187 = vsyncpa [#allocation3], 1
    %188 = vsyncpa [#allocation6], 1
    %189 = vsyncpa [#allocation4], 1

</llo_original>
